<compile_context>
chip_gen: v6e
topology: v6e:2x2x1
jax: 0.10.0
libtpu: 0.0.40
codegen_flags: <defaults>
</compile_context>

<pallas_src>
import jax
import jax.numpy as jnp
from jax.experimental import pallas as pl
from jax.experimental.pallas import tpu as pltpu

# ---- module hyper-parameters (small shapes consistent with the module) ----------
HIDDEN_SIZE = 32                 # config.hidden_size
DIM = HIDDEN_SIZE // 2           # self.dim = 16
LAYER_NUMS = 163                 # class_config.layer_nums
NODE_NUMS = 147                  # class_config.node_nums
N_PAD = 256                      # node_nums padded to a multiple of 128 (lane-dense stores)
BN_EPS = 1e-5


def _round_up(a, b):
    return (a + b - 1) // b * b


# ------------------------------- Pallas kernel -----------------------------------
def head_kernel(hid_ref, lay_ref,
                whf_ref, bhf_ref,           # hidden_score Linear, BN folded (bf16 W, f32 b)
                wlf_ref, blf_ref,           # layer_score  Linear, BN folded
                woh_ref, wol_ref, bout_ref, # out_proj split by rows + padded bias
                out_ref):
    # activations cast to bf16 so the dots take the native bf16 MXU path;
    # accumulation is f32 (preferred_element_type).
    hid = hid_ref[...].astype(jnp.bfloat16)                       # (TB, H)
    lay = lay_ref[...].astype(jnp.bfloat16)                       # (TB, L)

    # Linear + folded BatchNorm (eval) + Dropout(identity) + ReLU
    hs = jnp.dot(hid, whf_ref[...], preferred_element_type=jnp.float32) + bhf_ref[...]
    ls = jnp.dot(lay, wlf_ref[...], preferred_element_type=jnp.float32) + blf_ref[...]
    hs = jnp.maximum(hs, 0.0).astype(jnp.bfloat16)                # (TB, DIM)
    ls = jnp.maximum(ls, 0.0).astype(jnp.bfloat16)                # (TB, DIM)

    # out_proj on the (virtual) concat(hidden_score, layer_score): split-row form,
    # no in-kernel concatenate, lane-dense (TB, 256) store.
    out = (jnp.dot(hs, woh_ref[...], preferred_element_type=jnp.float32)
           + jnp.dot(ls, wol_ref[...], preferred_element_type=jnp.float32)
           + bout_ref[...])
    out_ref[...] = out


# ------------------------------- wrapper ------------------------------------------
@jax.jit
def classification_head_forward(layer_logits, hidden_states, params):
    """params: (whf, bhf, wlf, blf, wout_h, wout_l, bout_pad) -- BN already folded."""
    whf, bhf, wlf, blf, woh, wol, bout = params
    B, H = hidden_states.shape
    L = layer_logits.shape[1]

    tile_b = min(128, _round_up(B, 8))
    b_pad = _round_up(B, tile_b)
    if b_pad != B:
        pad = ((0, b_pad - B), (0, 0))
        hidden_states = jnp.pad(hidden_states, pad)
        layer_logits = jnp.pad(layer_logits, pad)

    def wspec(arr):
        return pl.BlockSpec(arr.shape, lambda i: (0, 0))   # VMEM-resident across the grid

    out = pl.pallas_call(
        head_kernel,
        out_shape=jax.ShapeDtypeStruct((b_pad, N_PAD), jnp.float32),
        grid_spec=pltpu.PrefetchScalarGridSpec(
            num_scalar_prefetch=0,
            grid=(b_pad // tile_b,),
            in_specs=[
                pl.BlockSpec((tile_b, H), lambda i: (i, 0)),
                pl.BlockSpec((tile_b, L), lambda i: (i, 0)),
                wspec(whf), wspec(bhf),
                wspec(wlf), wspec(blf),
                wspec(woh), wspec(wol), wspec(bout),
            ],
            out_specs=pl.BlockSpec((tile_b, N_PAD), lambda i: (i, 0)),
        ),
        compiler_params=pltpu.CompilerParams(
            dimension_semantics=("parallel",)),
    )(hidden_states, layer_logits, whf, bhf, wlf, blf, woh, wol, bout)

    return out[:B, :NODE_NUMS]


# --------------------------- parameter construction --------------------------------
def make_params(key):
    """Returns (kernel_params, raw_params).

    raw_params  : un-folded f32 PyTorch-style parameters (for the reference).
    kernel_params: BN folded into the score Linears, weights in bf16, out_proj split
                   by rows and padded to N_PAD lanes.
    """
    keys = iter(jax.random.split(key, 16))

    def lin(d_in, d_out):
        w = 0.1 * jax.random.normal(next(keys), (d_in, d_out), jnp.float32)
        b = 0.01 * jax.random.normal(next(keys), (1, d_out), jnp.float32)
        return w, b

    # raw PyTorch-equivalent parameters (weights stored as (in, out))
    wh, bh = lin(HIDDEN_SIZE, DIM)          # hidden_score
    wl, bl = lin(LAYER_NUMS, DIM)           # layer_score
    wout, bout = lin(2 * DIM, NODE_NUMS)    # out_proj
    # non-trivial BatchNorm running stats (so the fold is actually exercised)
    gamma = 1.0 + 0.2 * jax.random.normal(next(keys), (1, 2 * DIM), jnp.float32)
    beta = 0.1 * jax.random.normal(next(keys), (1, 2 * DIM), jnp.float32)
    r_mean = 0.1 * jax.random.normal(next(keys), (1, 2 * DIM), jnp.float32)
    r_var = 1.0 + 0.3 * jax.random.uniform(next(keys), (1, 2 * DIM), jnp.float32)

    raw = (wh, bh, wl, bl, wout, bout, gamma, beta, r_mean, r_var)

    # ---- fold eval-mode BN into the score Linears (exact) ----
    scale = gamma / jnp.sqrt(r_var + BN_EPS)                 # (1, 32)
    shift = beta - r_mean * scale
    # concat order in forward(): [hidden_score | layer_score]
    s_h, t_h = scale[:, :DIM], shift[:, :DIM]
    s_l, t_l = scale[:, DIM:], shift[:, DIM:]

    whf = (wh * s_h).astype(jnp.bfloat16)
    bhf = (bh * s_h + t_h).astype(jnp.float32)
    wlf = (wl * s_l).astype(jnp.bfloat16)
    blf = (bl * s_l + t_l).astype(jnp.float32)

    # ---- out_proj: pad columns to N_PAD (lane-dense), split rows by concat halves ----
    wout_pad = jnp.zeros((2 * DIM, N_PAD), jnp.float32).at[:, :NODE_NUMS].set(wout)
    bout_pad = jnp.zeros((1, N_PAD), jnp.float32).at[:, :NODE_NUMS].set(bout)
    woh = wout_pad[:DIM, :].astype(jnp.bfloat16)    # rows that multiply hidden_score
    wol = wout_pad[DIM:, :].astype(jnp.bfloat16)    # rows that multiply layer_score

    kernel_params = (whf, bhf, wlf, blf, woh, wol, bout_pad)
    return kernel_params, raw


# ------------------------------- pure-JAX reference --------------------------------
def reference_forward(layer_logits, hidden_states, raw):
    """Un-folded f32 reference matching the PyTorch forward (eval mode)."""
    wh, bh, wl, bl, wout, bout, gamma, beta, r_mean, r_var = raw
    hidden_score = hidden_states @ wh + bh
    layer_score = layer_logits @ wl + bl
    h = jnp.concatenate([hidden_score, layer_score], axis=-1)
    h = (h - r_mean) / jnp.sqrt(r_var + BN_EPS) * gamma + beta   # BatchNorm1d (eval)
    # Dropout: identity in eval
    h = jnp.maximum(h, 0.0)                                      # ReLU
    return h @ wout + bout


# ------------------------------------ main ------------------------------------------
if __name__ == "__main__":
    key = jax.random.PRNGKey(0)
    k_h, k_l, k_p = jax.random.split(key, 3)

    B = 8
    hidden_states = jax.random.normal(k_h, (B, HIDDEN_SIZE), jnp.float32)
    layer_logits = jax.random.normal(k_l, (B, LAYER_NUMS), jnp.float32)
    kernel_params, raw_params = make_params(k_p)

    out = classification_head_forward(layer_logits, hidden_states, kernel_params)
    jax.block_until_ready(out)

    # correctness check against the un-folded f32 reference (bf16 weights in the
    # kernel -> loosened tolerance)
    out_ref = reference_forward(layer_logits, hidden_states, raw_params)
    assert out.shape == (B, NODE_NUMS)
    assert jnp.allclose(out, out_ref, atol=3e-2, rtol=3e-2)

    print("KERNEL_OK")
</pallas_src>

<mosaic_0001>
module attributes {stable_mosaic.version = 11 : i64} {
  func.func @head_kernel(%arg0: i32, %arg1: memref<8x32xf32, #tpu.memory_space<vmem>>, %arg2: memref<8x163xf32, #tpu.memory_space<vmem>>, %arg3: memref<32x16xbf16, #tpu.memory_space<vmem>>, %arg4: memref<1x16xf32, #tpu.memory_space<vmem>>, %arg5: memref<163x16xbf16, #tpu.memory_space<vmem>>, %arg6: memref<1x16xf32, #tpu.memory_space<vmem>>, %arg7: memref<16x256xbf16, #tpu.memory_space<vmem>>, %arg8: memref<16x256xbf16, #tpu.memory_space<vmem>>, %arg9: memref<1x256xf32, #tpu.memory_space<vmem>>, %arg10: memref<8x256xf32, #tpu.memory_space<vmem>>) attributes {dimension_semantics = [#tpu.dimension_semantics<parallel>], iteration_bounds = array<i64: 1>, scalar_prefetch = 0 : i64, scratch_operands = 0 : i64, tpu.core_type = #tpu.core_type<tc>, window_params = [{transform_indices = @transform_0, window_bounds = array<i64: 8, 32>}, {transform_indices = @transform_1, window_bounds = array<i64: 8, 163>}, {pipeline_mode = #tpu.pipeline_mode<synchronous>, transform_indices = @transform_2, window_bounds = array<i64: 32, 16>}, {pipeline_mode = #tpu.pipeline_mode<synchronous>, transform_indices = @transform_3, window_bounds = array<i64: 1, 16>}, {pipeline_mode = #tpu.pipeline_mode<synchronous>, transform_indices = @transform_4, window_bounds = array<i64: 163, 16>}, {pipeline_mode = #tpu.pipeline_mode<synchronous>, transform_indices = @transform_5, window_bounds = array<i64: 1, 16>}, {pipeline_mode = #tpu.pipeline_mode<synchronous>, transform_indices = @transform_6, window_bounds = array<i64: 16, 256>}, {pipeline_mode = #tpu.pipeline_mode<synchronous>, transform_indices = @transform_7, window_bounds = array<i64: 16, 256>}, {pipeline_mode = #tpu.pipeline_mode<synchronous>, transform_indices = @transform_8, window_bounds = array<i64: 1, 256>}, {transform_indices = @transform_9, window_bounds = array<i64: 8, 256>}]} {
    %c0 = arith.constant 0 : index
    %c0_0 = arith.constant 0 : index
    %0 = vector.load %arg1[%c0, %c0_0] : memref<8x32xf32, #tpu.memory_space<vmem>>, vector<8x32xf32>
    %1 = arith.truncf %0 : vector<8x32xf32> to vector<8x32xbf16>
    %c0_1 = arith.constant 0 : index
    %c0_2 = arith.constant 0 : index
    %2 = vector.load %arg2[%c0_1, %c0_2] : memref<8x163xf32, #tpu.memory_space<vmem>>, vector<8x163xf32>
    %3 = arith.truncf %2 : vector<8x163xf32> to vector<8x163xbf16>
    %c0_3 = arith.constant 0 : index
    %c0_4 = arith.constant 0 : index
    %4 = vector.load %arg3[%c0_3, %c0_4] : memref<32x16xbf16, #tpu.memory_space<vmem>>, vector<32x16xbf16>
    %cst = arith.constant dense<0.000000e+00> : vector<8x16xf32>
    %5 = tpu.matmul %1, %4, %cst {dimension_numbers = #tpu.dot_dimension_numbers<[1], [0], [0], [1], [0, 0, 1, 1], [], []>} : vector<8x32xbf16>, vector<32x16xbf16>, vector<8x16xf32> -> vector<8x16xf32>
    %c0_5 = arith.constant 0 : index
    %c0_6 = arith.constant 0 : index
    %6 = vector.load %arg4[%c0_5, %c0_6] : memref<1x16xf32, #tpu.memory_space<vmem>>, vector<1x16xf32>
    %7 = vector.broadcast %6 : vector<1x16xf32> to vector<8x16xf32>
    %8 = arith.addf %5, %7 : vector<8x16xf32>
    %c0_7 = arith.constant 0 : index
    %c0_8 = arith.constant 0 : index
    %9 = vector.load %arg5[%c0_7, %c0_8] : memref<163x16xbf16, #tpu.memory_space<vmem>>, vector<163x16xbf16>
    %cst_9 = arith.constant dense<0.000000e+00> : vector<8x16xf32>
    %10 = tpu.matmul %3, %9, %cst_9 {dimension_numbers = #tpu.dot_dimension_numbers<[1], [0], [0], [1], [0, 0, 1, 1], [], []>} : vector<8x163xbf16>, vector<163x16xbf16>, vector<8x16xf32> -> vector<8x16xf32>
    %c0_10 = arith.constant 0 : index
    %c0_11 = arith.constant 0 : index
    %11 = vector.load %arg6[%c0_10, %c0_11] : memref<1x16xf32, #tpu.memory_space<vmem>>, vector<1x16xf32>
    %12 = vector.broadcast %11 : vector<1x16xf32> to vector<8x16xf32>
    %13 = arith.addf %10, %12 : vector<8x16xf32>
    %cst_12 = arith.constant 0.000000e+00 : f32
    %14 = vector.broadcast %cst_12 : f32 to vector<8x16xf32>
    %15 = arith.maximumf %8, %14 : vector<8x16xf32>
    %16 = arith.truncf %15 : vector<8x16xf32> to vector<8x16xbf16>
    %cst_13 = arith.constant 0.000000e+00 : f32
    %17 = vector.broadcast %cst_13 : f32 to vector<8x16xf32>
    %18 = arith.maximumf %13, %17 : vector<8x16xf32>
    %19 = arith.truncf %18 : vector<8x16xf32> to vector<8x16xbf16>
    %c0_14 = arith.constant 0 : index
    %c0_15 = arith.constant 0 : index
    %20 = vector.load %arg7[%c0_14, %c0_15] : memref<16x256xbf16, #tpu.memory_space<vmem>>, vector<16x256xbf16>
    %cst_16 = arith.constant dense<0.000000e+00> : vector<8x256xf32>
    %21 = tpu.matmul %16, %20, %cst_16 {dimension_numbers = #tpu.dot_dimension_numbers<[1], [0], [0], [1], [0, 0, 1, 1], [], []>} : vector<8x16xbf16>, vector<16x256xbf16>, vector<8x256xf32> -> vector<8x256xf32>
    %c0_17 = arith.constant 0 : index
    %c0_18 = arith.constant 0 : index
    %22 = vector.load %arg8[%c0_17, %c0_18] : memref<16x256xbf16, #tpu.memory_space<vmem>>, vector<16x256xbf16>
    %cst_19 = arith.constant dense<0.000000e+00> : vector<8x256xf32>
    %23 = tpu.matmul %19, %22, %cst_19 {dimension_numbers = #tpu.dot_dimension_numbers<[1], [0], [0], [1], [0, 0, 1, 1], [], []>} : vector<8x16xbf16>, vector<16x256xbf16>, vector<8x256xf32> -> vector<8x256xf32>
    %24 = arith.addf %21, %23 : vector<8x256xf32>
    %c0_20 = arith.constant 0 : index
    %c0_21 = arith.constant 0 : index
    %25 = vector.load %arg9[%c0_20, %c0_21] : memref<1x256xf32, #tpu.memory_space<vmem>>, vector<1x256xf32>
    %26 = vector.broadcast %25 : vector<1x256xf32> to vector<8x256xf32>
    %27 = arith.addf %24, %26 : vector<8x256xf32>
    %c0_22 = arith.constant 0 : index
    %c0_23 = arith.constant 0 : index
    %28 = vector.load %arg10[%c0_22, %c0_23] : memref<8x256xf32, #tpu.memory_space<vmem>>, vector<8x256xf32>
    tpu.vector_store %arg10[%c0_22, %c0_23], %27 {strides = array<i32>} : memref<8x256xf32, #tpu.memory_space<vmem>>, vector<8x256xf32>,
    return
  }
  func.func @transform_0(%arg0: i32) -> (i32, i32) {
    %c0_i32 = arith.constant 0 : i32
    %c0_i32_0 = arith.constant 0 : i32
    return %arg0, %c0_i32 : i32, i32
  }
  func.func @transform_1(%arg0: i32) -> (i32, i32) {
    %c0_i32 = arith.constant 0 : i32
    %c0_i32_0 = arith.constant 0 : i32
    return %arg0, %c0_i32 : i32, i32
  }
  func.func @transform_2(%arg0: i32) -> (i32, i32) {
    %c0_i32 = arith.constant 0 : i32
    %c0_i32_0 = arith.constant 0 : i32
    %c0_i32_1 = arith.constant 0 : i32
    return %c0_i32, %c0_i32_0 : i32, i32
  }
  func.func @transform_3(%arg0: i32) -> (i32, i32) {
    %c0_i32 = arith.constant 0 : i32
    %c0_i32_0 = arith.constant 0 : i32
    %c0_i32_1 = arith.constant 0 : i32
    return %c0_i32, %c0_i32_0 : i32, i32
  }
  func.func @transform_4(%arg0: i32) -> (i32, i32) {
    %c0_i32 = arith.constant 0 : i32
    %c0_i32_0 = arith.constant 0 : i32
    %c0_i32_1 = arith.constant 0 : i32
    return %c0_i32, %c0_i32_0 : i32, i32
  }
  func.func @transform_5(%arg0: i32) -> (i32, i32) {
    %c0_i32 = arith.constant 0 : i32
    %c0_i32_0 = arith.constant 0 : i32
    %c0_i32_1 = arith.constant 0 : i32
    return %c0_i32, %c0_i32_0 : i32, i32
  }
  func.func @transform_6(%arg0: i32) -> (i32, i32) {
    %c0_i32 = arith.constant 0 : i32
    %c0_i32_0 = arith.constant 0 : i32
    %c0_i32_1 = arith.constant 0 : i32
    return %c0_i32, %c0_i32_0 : i32, i32
  }
  func.func @transform_7(%arg0: i32) -> (i32, i32) {
    %c0_i32 = arith.constant 0 : i32
    %c0_i32_0 = arith.constant 0 : i32
    %c0_i32_1 = arith.constant 0 : i32
    return %c0_i32, %c0_i32_0 : i32, i32
  }
  func.func @transform_8(%arg0: i32) -> (i32, i32) {
    %c0_i32 = arith.constant 0 : i32
    %c0_i32_0 = arith.constant 0 : i32
    %c0_i32_1 = arith.constant 0 : i32
    return %c0_i32, %c0_i32_0 : i32, i32
  }
  func.func @transform_9(%arg0: i32) -> (i32, i32) {
    %c0_i32 = arith.constant 0 : i32
    %c0_i32_0 = arith.constant 0 : i32
    return %arg0, %c0_i32 : i32, i32
  }
}

</mosaic_0001>

<llo_original>
// kernel: classification_head_forward.1
$region0: #{classification_head_forward.1}
  #allocation0 [shape = 'u32[]', space=smem, size = 0x4, offset = 0x4, fixed_abs, tag = 'smem constant byte address 0x4 - core index']
  #allocation1 [shape = 'u32[144,128]{1,0:T(1,128)}', space=vmem, size = 0x12000, scoped, tag = 'internal scratch']
  %s0 = inlined_call_operand.vmem [shape: f32[8,32], index: 0, kind: input, shape index: {}]
  %s1 = inlined_call_operand.vmem [shape: f32[8,163], index: 1, kind: input, shape index: {}]
  %s2 = inlined_call_operand.vmem [shape: bf16[32,16], index: 2, kind: input, shape index: {}]
  %s3 = inlined_call_operand.vmem [shape: f32[1,16], index: 3, kind: input, shape index: {}]
  %s4 = inlined_call_operand.vmem [shape: bf16[163,16], index: 4, kind: input, shape index: {}]
  %s5 = inlined_call_operand.vmem [shape: f32[1,16], index: 5, kind: input, shape index: {}]
  %s6 = inlined_call_operand.vmem [shape: bf16[16,256], index: 6, kind: input, shape index: {}]
  %s7 = inlined_call_operand.vmem [shape: bf16[16,256], index: 7, kind: input, shape index: {}]
  %s8 = inlined_call_operand.vmem [shape: f32[1,256], index: 8, kind: input, shape index: {}]
  %s9 = inlined_call_operand.hbm [shape: f32[8,256], index: 9, kind: output, shape index: {}]
  %s10 = sld [smem:[#allocation0]]
  $region46: #{classification_head_forward.1} parent=0
    _
  %s12 = ssub.s32 1, %s10
  %s13 = scalar_select 0, %s12, %s10
  $region1: #{classification_head_forward.1} parent=0
    #allocation2 [shape = 'u8[8192]{0}', space=vmem, size = 0x2000, scoped, tag = 'output window, operand 0, single buffered']
    #allocation3 [shape = 's32[1]{0}', space=sflag, size = 0x4, scoped, tag = 'scoped memory for classification_head_forward.1']
    %14 = vsyncpa [#allocation3], 0
    // Predicated region
    $region2: #{classification_head_forward.1} parent=1 // pred_check
      _
    $region3: #{classification_head_forward.1} parent=1 // pred_check_branch
      %16 = sbr.rel (0) target = $region5
    $region4: #{classification_head_forward.1} parent=1 // pred_region
      _
    $region5: #{classification_head_forward.1} parent=1 // pred_fallthru
      _
    // Predicated region
    $region6: #{classification_head_forward.1} parent=1 // pred_check
      _
    $region7: #{classification_head_forward.1} parent=1 // pred_check_branch
      %18 = sbr.rel (0) target = $region9
    $region8: #{classification_head_forward.1} parent=1 // pred_region
      _
    $region9: #{classification_head_forward.1} parent=1 // pred_fallthru
      _
    // Predicated region
    $region10: #{classification_head_forward.1} parent=1 // pred_check
      _
    $region11: #{classification_head_forward.1} parent=1 // pred_check_branch
      %20 = sbr.rel (0) target = $region13
    $region12: #{classification_head_forward.1} parent=1 // pred_region
      _
    $region13: #{classification_head_forward.1} parent=1 // pred_fallthru
      _
    // Predicated region
    $region14: #{classification_head_forward.1} parent=1 // pred_check
      _
    $region15: #{classification_head_forward.1} parent=1 // pred_check_branch
      %22 = sbr.rel (0) target = $region17
    $region16: #{classification_head_forward.1} parent=1 // pred_region
      _
    $region17: #{classification_head_forward.1} parent=1 // pred_fallthru
      _
    // Predicated region
    $region18: #{classification_head_forward.1} parent=1 // pred_check
      _
    $region19: #{classification_head_forward.1} parent=1 // pred_check_branch
      %24 = sbr.rel (0) target = $region21
    $region20: #{classification_head_forward.1} parent=1 // pred_region
      _
    $region21: #{classification_head_forward.1} parent=1 // pred_fallthru
      _
    // Predicated region
    $region22: #{classification_head_forward.1} parent=1 // pred_check
      _
    $region23: #{classification_head_forward.1} parent=1 // pred_check_branch
      %26 = sbr.rel (0) target = $region25
    $region24: #{classification_head_forward.1} parent=1 // pred_region
      _
    $region25: #{classification_head_forward.1} parent=1 // pred_fallthru
      _
    // Predicated region
    $region26: #{classification_head_forward.1} parent=1 // pred_check
      _
    $region27: #{classification_head_forward.1} parent=1 // pred_check_branch
      %28 = sbr.rel (0) target = $region29
    $region28: #{classification_head_forward.1} parent=1 // pred_region
      _
    $region29: #{classification_head_forward.1} parent=1 // pred_fallthru
      _
    // Predicated region
    $region30: #{classification_head_forward.1} parent=1 // pred_check
      _
    $region31: #{classification_head_forward.1} parent=1 // pred_check_branch
      %30 = sbr.rel (0) target = $region33
    $region32: #{classification_head_forward.1} parent=1 // pred_region
      _
    $region33: #{classification_head_forward.1} parent=1 // pred_fallthru
      _
    // Predicated region
    $region34: #{classification_head_forward.1} parent=1 // pred_check
      _
    $region35: #{classification_head_forward.1} parent=1 // pred_check_branch
      %32 = sbr.rel (0) target = $region37
    $region36: #{classification_head_forward.1} parent=1 // pred_region
      _
    $region37: #{classification_head_forward.1} parent=1 // pred_fallthru
      _
    %v34 = vld [vmem:[%s0] sm:$0xff]
    %v35 = vpack.c.bf16 %v34, %v34
    %v36 = vld [vmem:[%s1] sm:$0xff]
    %v37 = vld [vmem:[%s1 + $0x8] sm:$0xff]
    %v38 = vpack.c.bf16 %v36, %v36
    %v39 = vpack.c.bf16 %v37, %v37
    %v40 = vld [vmem:[%s2] sm:$0xf]
    %v41 = vld [vmem:[%s2 + $0x4] sm:$0xf]
    %v42 = vld [vmem:[%s2 + $0x8] sm:$0xf]
    %v43 = vld [vmem:[%s2 + $0xc] sm:$0xf]
    %v44 = vld [vmem:[%s3] sm:$0x1]
    %v46 = vlaneseq
    %v47 = vshrl.u32 %v46, 7
    %v48 = vsub.s32 0, %v47
    %v49 = vrot.slane %v44, %v48
    %v55 = vunpack.c.l.b16 %v40
    %v56 = vunpack.c.l.b16 %v41
    %v57 = vunpack.c.l.b16 %v42
    %v58 = vunpack.c.l.b16 %v43
    %v59 = vpack.c.b16 %v56, %v55
    %v60 = vpack.c.b16 %v58, %v57
    %vm63 = vcmask 261120
    %v65 = vsel %vm63, %v35, 0
    %67 = vmatprep.subr.bf16.mxu0 0
    %68 = vmatpush1.bf16.msra.mxu0 0
    %69 = vmatprep.subr.bf16.mxu0 0
    %70 = vmatpush1.bf16.msra.mxu0 0
    %71 = vmatprep.subr.bf16.mxu0 0
    %72 = vmatpush1.bf16.msra.mxu0 0
    %73 = vmatprep.subr.bf16.mxu0 0
    %74 = vmatpush1.bf16.msra.mxu0 0
    %75 = vmatprep.subr.bf16.mxu0 0
    %76 = vmatpush1.bf16.msra.mxu0 0
    %77 = vmatprep.subr.bf16.mxu0 0
    %78 = vmatpush1.bf16.msra.mxu0 0
    %79 = vmatprep.subr.bf16.mxu0 0
    %80 = vmatpush1.bf16.msra.mxu0 %v60
    %81 = vmatprep.subr.bf16.mxu0 0
    %82 = vmatpush1.bf16.msra.mxu0 %v59
    %83 = vmatprep.subr.bf16.mxu0 0
    %84 = vmatpush2.bf16.msra.mxu0 0
    %85 = vmatprep.subr.bf16.mxu0 0
    %86 = vmatpush2.bf16.msra.mxu0 0
    %87 = vmatprep.subr.bf16.mxu0 0
    %88 = vmatpush2.bf16.msra.mxu0 0
    %89 = vmatprep.subr.bf16.mxu0 0
    %90 = vmatpush2.bf16.msra.mxu0 0
    %91 = vmatprep.subr.bf16.mxu0 0
    %92 = vmatpush2.bf16.msra.mxu0 0
    %93 = vmatprep.subr.bf16.mxu0 0
    %94 = vmatpush2.bf16.msra.mxu0 0
    %95 = vmatprep.subr.bf16.mxu0 0
    %96 = vmatpush2.bf16.msra.mxu0 0
    %97 = vmatprep.subr.bf16.mxu0 0
    %98 = vmatpush2.bf16.msra.mxu0 0
    %99 = vmatprep.mubr.bf16.mxu0 0
    %100 = vmatmul.mubr.bf16.gmra.mxu0 %v65
    %v101 = vpop.f32.mrf.mxu0
    %v102 = vadd.f32 %v49, %v101
    %v103 = vpop.f32.mrf.mxu0
    %v104 = vpop.f32.mrf.mxu0
    %v105 = vpop.f32.mrf.mxu0
    %106 = vdwg.mxu0
    %v107 = vld [vmem:[%s4] sm:$0xf]
    %v108 = vld [vmem:[%s4 + $0x4] sm:$0xf]
    %v109 = vld [vmem:[%s4 + $0x8] sm:$0xf]
    %v110 = vld [vmem:[%s4 + $0xc] sm:$0xf]
    %v111 = vld [vmem:[%s4 + $0x10] sm:$0xf]
    %v112 = vld [vmem:[%s4 + $0x14] sm:$0xf]
    %v113 = vld [vmem:[%s4 + $0x18] sm:$0xf]
    %v114 = vld [vmem:[%s4 + $0x1c] sm:$0xf]
    %v115 = vld [vmem:[%s4 + $0x20] sm:$0xf]
    %v116 = vld [vmem:[%s4 + $0x24] sm:$0xf]
    %v117 = vld [vmem:[%s4 + $0x28] sm:$0xf]
    %v118 = vld [vmem:[%s4 + $0x2c] sm:$0xf]
    %v119 = vld [vmem:[%s4 + $0x30] sm:$0xf]
    %v120 = vld [vmem:[%s4 + $0x34] sm:$0xf]
    %v121 = vld [vmem:[%s4 + $0x38] sm:$0xf]
    %v122 = vld [vmem:[%s4 + $0x3c] sm:$0xf]
    %v123 = vld [vmem:[%s4 + $0x40] sm:$0xf]
    %v124 = vld [vmem:[%s4 + $0x44] sm:$0xf]
    %v125 = vld [vmem:[%s4 + $0x48] sm:$0xf]
    %v126 = vld [vmem:[%s4 + $0x4c] sm:$0xf]
    %v127 = vld [vmem:[%s4 + $0x50] sm:$0x3]
    %v128 = vld [vmem:[%s5] sm:$0x1]
    %v130 = vlaneseq
    %v131 = vshrl.u32 %v130, 7
    %v132 = vsub.s32 0, %v131
    %v133 = vrot.slane %v128, %v132
    %v156 = vunpack.c.l.b16 %v107
    %v157 = vunpack.c.l.b16 %v108
    %v158 = vunpack.c.l.b16 %v109
    %v159 = vunpack.c.l.b16 %v110
    %v160 = vunpack.c.l.b16 %v111
    %v161 = vunpack.c.l.b16 %v112
    %v162 = vunpack.c.l.b16 %v113
    %v163 = vunpack.c.l.b16 %v114
    %v164 = vunpack.c.l.b16 %v115
    %v165 = vunpack.c.l.b16 %v116
    %v166 = vunpack.c.l.b16 %v117
    %v167 = vunpack.c.l.b16 %v118
    %v168 = vunpack.c.l.b16 %v119
    %v169 = vunpack.c.l.b16 %v120
    %v170 = vunpack.c.l.b16 %v121
    %v171 = vunpack.c.l.b16 %v122
    %v172 = vunpack.c.l.b16 %v123
    %v173 = vunpack.c.l.b16 %v124
    %v174 = vunpack.c.l.b16 %v125
    %v175 = vunpack.c.l.b16 %v126
    %v176 = vunpack.c.l.b16 %v127
    %v177 = vpack.c.b16 %v157, %v156
    %v178 = vpack.c.b16 %v159, %v158
    %v179 = vpack.c.b16 %v161, %v160
    %v180 = vpack.c.b16 %v163, %v162
    %v181 = vpack.c.b16 %v165, %v164
    %v182 = vpack.c.b16 %v167, %v166
    %v183 = vpack.c.b16 %v169, %v168
    %v184 = vpack.c.b16 %v171, %v170
    %v185 = vpack.c.b16 %v173, %v172
    %v186 = vpack.c.b16 %v175, %v174
    %v187 = vpack.c.b16 %v176, %v176
    %vm198 = vcmask 285696
    %v200 = vsel %vm198, %v39, 0
    %vm202 = vcmask 1040384
    %vm203 = vcmask 1041408
    %v204 = vsel %vm202, 4294967295, 65535
    %v205 = vsel %vm203, %v204, 0
    %v207 = vand.u32 %v187, %v205
    %209 = vmatprep.subr.bf16.mxu0 0
    %210 = vmatpush1.bf16.msra.mxu0 %v184
    %211 = vmatprep.subr.bf16.mxu0 0
    %212 = vmatpush1.bf16.msra.mxu0 %v183
    %213 = vmatprep.subr.bf16.mxu0 0
    %214 = vmatpush1.bf16.msra.mxu0 %v182
    %215 = vmatprep.subr.bf16.mxu0 0
    %216 = vmatpush1.bf16.msra.mxu0 %v181
    %217 = vmatprep.subr.bf16.mxu0 0
    %218 = vmatpush1.bf16.msra.mxu0 %v180
    %219 = vmatprep.subr.bf16.mxu0 0
    %220 = vmatpush1.bf16.msra.mxu0 %v179
    %221 = vmatprep.subr.bf16.mxu0 0
    %222 = vmatpush1.bf16.msra.mxu0 %v178
    %223 = vmatprep.subr.bf16.mxu0 0
    %224 = vmatpush1.bf16.msra.mxu0 %v177
    %225 = vmatprep.subr.bf16.mxu0 0
    %226 = vmatpush2.bf16.msra.mxu0 0
    %227 = vmatprep.subr.bf16.mxu0 0
    %228 = vmatpush2.bf16.msra.mxu0 0
    %229 = vmatprep.subr.bf16.mxu0 0
    %230 = vmatpush2.bf16.msra.mxu0 0
    %231 = vmatprep.subr.bf16.mxu0 0
    %232 = vmatpush2.bf16.msra.mxu0 0
    %233 = vmatprep.subr.bf16.mxu0 0
    %234 = vmatpush2.bf16.msra.mxu0 0
    %235 = vmatprep.subr.bf16.mxu0 0
    %236 = vmatpush2.bf16.msra.mxu0 %v207
    %237 = vmatprep.subr.bf16.mxu0 0
    %238 = vmatpush2.bf16.msra.mxu0 %v186
    %239 = vmatprep.subr.bf16.mxu0 0
    %240 = vmatpush2.bf16.msra.mxu0 %v185
    %241 = vmatprep.mubr.bf16.mxu0 %v200
    %242 = vmatmul.mubr.bf16.gmra.mxu0 %v38
    %v243 = vpop.f32.mrf.mxu0
    %v244 = vadd.f32 %v133, %v243
    %v245 = vpop.f32.mrf.mxu0
    %v246 = vpop.f32.mrf.mxu0
    %v247 = vpop.f32.mrf.mxu0
    %248 = vdwg.mxu0
    %v249 = vmax.f32 %v102, 0.0
    %v250 = vpack.c.bf16 %v249, %v249
    %v251 = vmax.f32 %v244, 0.0
    %v252 = vpack.c.bf16 %v251, %v251
    %v253 = vld [vmem:[%s6] sm:$0xff]
    %v254 = vld [vmem:[%s6 + $0x8] sm:$0xff]
    %v255 = vld [vmem:[%s7] sm:$0xff]
    %v256 = vld [vmem:[%s7 + $0x8] sm:$0xff]
    %v259 = vunpack.c.l.b16 %v255
    %v260 = vunpack.c.h.b16 %v255
    %v261 = vunpack.c.l.b16 %v256
    %v262 = vunpack.c.h.b16 %v256
    %v263 = vpack.c.b16 %v261, %v259
    %v264 = vpack.c.b16 %v262, %v260
    %vm267 = vcmask 130048
    %v269 = vsel %vm267, %v252, 0
    %271 = vmatprep.subr.bf16.mxu0 0
    %272 = vmatpush1.bf16.msra.mxu0 0
    %273 = vmatprep.subr.bf16.mxu0 0
    %274 = vmatpush1.bf16.msra.mxu0 0
    %275 = vmatprep.subr.bf16.mxu0 0
    %276 = vmatpush1.bf16.msra.mxu0 0
    %277 = vmatprep.subr.bf16.mxu0 0
    %278 = vmatpush1.bf16.msra.mxu0 0
    %279 = vmatprep.subr.bf16.mxu0 0
    %280 = vmatpush1.bf16.msra.mxu0 0
    %281 = vmatprep.subr.bf16.mxu0 0
    %282 = vmatpush1.bf16.msra.mxu0 0
    %283 = vmatprep.subr.bf16.mxu0 0
    %284 = vmatpush1.bf16.msra.mxu0 0
    %285 = vmatprep.subr.bf16.mxu0 %v264
    %286 = vmatpush1.bf16.msra.mxu0 %v263
    %287 = vmatprep.subr.bf16.mxu0 0
    %288 = vmatpush2.bf16.msra.mxu0 0
    %289 = vmatprep.subr.bf16.mxu0 0
    %290 = vmatpush2.bf16.msra.mxu0 0
    %291 = vmatprep.subr.bf16.mxu0 0
    %292 = vmatpush2.bf16.msra.mxu0 0
    %293 = vmatprep.subr.bf16.mxu0 0
    %294 = vmatpush2.bf16.msra.mxu0 0
    %295 = vmatprep.subr.bf16.mxu0 0
    %296 = vmatpush2.bf16.msra.mxu0 0
    %297 = vmatprep.subr.bf16.mxu0 0
    %298 = vmatpush2.bf16.msra.mxu0 0
    %299 = vmatprep.subr.bf16.mxu0 0
    %300 = vmatpush2.bf16.msra.mxu0 0
    %301 = vmatprep.subr.bf16.mxu0 0
    %302 = vmatpush2.bf16.msra.mxu0 0
    %303 = vmatprep.mubr.bf16.mxu0 0
    %304 = vmatmul.mubr.bf16.gmra.mxu0 %v269
    %v305 = vpop.f32.mrf.mxu0
    %v306 = vadd.f32 0.0, %v305
    %v307 = vpop.f32.mrf.mxu0
    %v308 = vadd.f32 0.0, %v307
    %v309 = vpop.f32.mrf.mxu0
    %v310 = vpop.f32.mrf.mxu0
    %311 = vdwg.mxu0
    %v314 = vunpack.c.l.b16 %v253
    %v315 = vunpack.c.h.b16 %v253
    %v316 = vunpack.c.l.b16 %v254
    %v317 = vunpack.c.h.b16 %v254
    %v318 = vpack.c.b16 %v316, %v314
    %v319 = vpack.c.b16 %v317, %v315
    %v323 = vsel %vm267, %v250, 0
    %325 = vmatprep.subr.bf16.mxu0 0
    %326 = vmatpush1.bf16.msra.mxu0 0
    %327 = vmatprep.subr.bf16.mxu0 0
    %328 = vmatpush1.bf16.msra.mxu0 0
    %329 = vmatprep.subr.bf16.mxu0 0
    %330 = vmatpush1.bf16.msra.mxu0 0
    %331 = vmatprep.subr.bf16.mxu0 0
    %332 = vmatpush1.bf16.msra.mxu0 0
    %333 = vmatprep.subr.bf16.mxu0 0
    %334 = vmatpush1.bf16.msra.mxu0 0
    %335 = vmatprep.subr.bf16.mxu0 0
    %336 = vmatpush1.bf16.msra.mxu0 0
    %337 = vmatprep.subr.bf16.mxu0 0
    %338 = vmatpush1.bf16.msra.mxu0 0
    %339 = vmatprep.subr.bf16.mxu0 %v319
    %340 = vmatpush1.bf16.msra.mxu0 %v318
    %341 = vmatprep.subr.bf16.mxu0 0
    %342 = vmatpush2.bf16.msra.mxu0 0
    %343 = vmatprep.subr.bf16.mxu0 0
    %344 = vmatpush2.bf16.msra.mxu0 0
    %345 = vmatprep.subr.bf16.mxu0 0
    %346 = vmatpush2.bf16.msra.mxu0 0
    %347 = vmatprep.subr.bf16.mxu0 0
    %348 = vmatpush2.bf16.msra.mxu0 0
    %349 = vmatprep.subr.bf16.mxu0 0
    %350 = vmatpush2.bf16.msra.mxu0 0
    %351 = vmatprep.subr.bf16.mxu0 0
    %352 = vmatpush2.bf16.msra.mxu0 0
    %353 = vmatprep.subr.bf16.mxu0 0
    %354 = vmatpush2.bf16.msra.mxu0 0
    %355 = vmatprep.subr.bf16.mxu0 0
    %356 = vmatpush2.bf16.msra.mxu0 0
    %357 = vmatprep.mubr.bf16.mxu0 0
    %358 = vmatmul.mubr.bf16.gmra.mxu0 %v323
    %v359 = vpop.f32.mrf.mxu0
    %v360 = vadd.f32 %v306, %v359
    %v361 = vpop.f32.mrf.mxu0
    %v362 = vadd.f32 %v308, %v361
    %v363 = vpop.f32.mrf.mxu0
    %v364 = vpop.f32.mrf.mxu0
    %365 = vdwg.mxu0
    %v366 = vld [vmem:[%s8] sm:$0x3]
    %v368 = vlaneseq
    %v369 = vshrl.u32 %v368, 7
    %v370 = vsub.s32 0, %v369
    %v371 = vrot.slane %v366, %v370
    %v372 = vlaneseq
    %v373 = vshrl.u32 %v372, 7
    %v374 = vsub.s32 1, %v373
    %v375 = vrot.slane %v366, %v374
    %v378 = vadd.f32 %v360, %v371
    %v379 = vadd.f32 %v362, %v375
    %380 = vst [vmem:[#allocation2] sm:$0xff] %v378
    %381 = vst [vmem:[#allocation2 + $0x8] sm:$0xff] %v379
    // Predicated region
    $region38: #{classification_head_forward.1} parent=1 // pred_check
      _
    $region39: #{classification_head_forward.1} parent=1 // pred_check_branch
      %383 = sbr.rel (0) target = $region41
    $region40: #{classification_head_forward.1} parent=1 // pred_region
      %s385 = ssub.s32 256, 256
      %386 = vsyncadd [#allocation3], %s385
      %s388 = sshll.u32 [#allocation2], 4
      %s389 = int_to_ptr.vmem [resolvable:$true] %s388
      %391 = dma.vmem_to_hbm [thread:$0]  %s389, 256, %s9, [#allocation3]
    $region41: #{classification_head_forward.1} parent=1 // pred_fallthru
      _
    // Predicated region
    $region42: #{classification_head_forward.1} parent=1 // pred_check
      _
    $region43: #{classification_head_forward.1} parent=1 // pred_check_branch
      %393 = sbr.rel (0) target = $region45
    $region44: #{classification_head_forward.1} parent=1 // pred_region
      %394 = dma.done [#allocation3], 256
    $region45: #{classification_head_forward.1} parent=1 // pred_fallthru
      _
    %395 = vsyncpa [#allocation3], 1

</llo_original>
